<compile_context>
chip_gen: v7x
topology: tpu7x:2x2x1
jax: 0.10.0
libtpu: 0.0.40
codegen_flags: <defaults>
</compile_context>

<pallas_src>
import jax
import jax.numpy as jnp
from jax import lax
from jax.experimental import pallas as pl
from jax.experimental.pallas import tpu as pltpu

KSIZE = 7
PAD = 3  # padding = 3 for kernel_size = 7 (PyTorch "same"-style zero padding)


def _round_up(n, m):
    return ((n + m - 1) // m) * m


def _divisors(n):
    out = set()
    d = 1
    while d * d <= n:
        if n % d == 0:
            out.add(d)
            out.add(n // d)
        d += 1
    return sorted(out)


def _pick_tiles(C, HW, elt_bytes, in_buf_budget=8 << 20, out_buf_budget=2 << 20):
    """Pick (channel_tile, hw_tile) from the real padded VMEM footprint (x2 double buffered)."""
    sub_pack = max(1, 4 // elt_bytes)  # channel rows packed per 32-bit sublane word

    def in_tile_bytes(tc, hw):
        return _round_up(tc, 8 * sub_pack) * _round_up(hw, 128) * elt_bytes

    def out_row_bytes(hw):
        return 8 * _round_up(hw, 128) * 4  # (1, 1, hw) f32 block, padded to 8 sublanes

    min_tc = min(C, 8 * sub_pack)

    # Spatial tile: keep the full flattened row unless it alone blows the budget.
    hw_cands = [d for d in _divisors(HW) if d % 128 == 0 or d == HW]
    if out_row_bytes(HW) <= out_buf_budget and in_tile_bytes(min_tc, HW) <= in_buf_budget:
        hw_t = HW
    else:
        fits = [d for d in hw_cands
                if out_row_bytes(d) <= out_buf_budget
                and in_tile_bytes(min_tc, d) <= in_buf_budget]
        hw_t = max(fits) if fits else min(hw_cands)

    # Channel tile: largest legal divisor (8-multiple or full C) whose padded tile fits.
    tc_cands = [d for d in _divisors(C) if d % 8 == 0 or d == C]
    fits = [d for d in tc_cands if in_tile_bytes(d, hw_t) <= in_buf_budget]
    tc = max(fits) if fits else min(tc_cands)
    return tc, hw_t


def channel_max_kernel(x_ref, o_ref):
    # x_ref: (1, tc, hw_t) native dtype VMEM -- one channel tile of one batch / spatial tile
    # o_ref: (1, 1, hw_t)  f32          VMEM -- running channel max (resident across channel axis)
    c = pl.program_id(2)
    m = jnp.max(x_ref[0], axis=0, keepdims=True).astype(jnp.float32)  # (1, hw_t)

    @pl.when(c == 0)
    def _():
        o_ref[0] = m

    @pl.when(c > 0)
    def _():
        o_ref[0] = jnp.maximum(o_ref[0], m)


def conv_sigmoid_kernel(w_ref, m_ref, o_ref, buf_ref):
    # w_ref:   (49,)        f32 SMEM -- flat 7x7 conv taps, w[ki*7 + kj]
    # m_ref:   (1, H, W)    f32 VMEM -- channel-max map for one batch element
    # o_ref:   (1, H, Wm)   out dtype VMEM -- lane-dense output slab (wrapper slices to W)
    # buf_ref: (Hp, Wp)     f32 VMEM -- aligned zero-padded max map (rolled in place)
    H = m_ref.shape[1]
    W = m_ref.shape[2]
    Wm = o_ref.shape[2]
    Hp, Wp = buf_ref.shape

    # Zero only the halo / alignment strips; the interior is overwritten right after.
    buf_ref[pl.ds(0, PAD), :] = jnp.zeros((PAD, Wp), jnp.float32)
    buf_ref[pl.ds(PAD + H, Hp - PAD - H), :] = jnp.zeros((Hp - PAD - H, Wp), jnp.float32)
    buf_ref[:, pl.ds(0, PAD)] = jnp.zeros((Hp, PAD), jnp.float32)
    buf_ref[:, pl.ds(PAD + W, Wp - PAD - W)] = jnp.zeros((Hp, Wp - PAD - W), jnp.float32)

    # Paste the max map into the interior of the padded buffer.
    buf_ref[pl.ds(PAD, H), pl.ds(PAD, W)] = m_ref[0].astype(jnp.float32)

    # 7x7 cross-correlation: roll the padded map left by one lane per kernel column (XLU slot),
    # sum the 7 row taps of that column into one expression, add to the accumulator once.
    acc = None
    for kj in range(KSIZE):
        if kj > 0:
            # buf[:, col] <- buf[:, col + 1]; wrap only lands in discarded cols >= W.
            buf_ref[...] = pltpu.roll(buf_ref[...], shift=Wp - 1, axis=1)
        col = w_ref[0 * KSIZE + kj] * buf_ref[pl.ds(0, H), :]
        for ki in range(1, KSIZE):
            col = col + w_ref[ki * KSIZE + kj] * buf_ref[pl.ds(ki, H), :]
        acc = col if acc is None else acc + col

    # Lane-dense (unmasked) store; cols >= W are garbage and sliced off in the wrapper.
    o_ref[0] = jax.nn.sigmoid(acc[:, :Wm]).astype(o_ref.dtype)


def spatial_attention(x, weight, *, channel_tile=None, hw_tile=None):
    """x: (B, C, H, W) float, weight: (7, 7) -> (B, 1, H, W) in x.dtype."""
    B, C, H, W = x.shape
    HW = H * W
    elt = x.dtype.itemsize
    w_flat = weight.reshape(-1).astype(jnp.float32)
    assert w_flat.shape[0] == KSIZE * KSIZE

    tc, hw_t = _pick_tiles(C, HW, elt)
    if channel_tile is not None:
        tc = channel_tile
    if hw_tile is not None:
        hw_t = hw_tile
    assert C % tc == 0 and (tc == C or tc % 8 == 0)
    assert HW % hw_t == 0 and (hw_t == HW or hw_t % 128 == 0)
    n_ct = C // tc
    n_hw = HW // hw_t

    x_flat = x.reshape(B, C, HW)  # free view of contiguous NCHW -> lane-dense streaming read

    # ---------- pass 1: channel max (dominant HBM read, streamed in native dtype) ----------
    sub_pack = max(1, 4 // elt)
    in_tile_bytes = _round_up(tc, 8 * sub_pack) * _round_up(hw_t, 128) * elt
    out_row_bytes = 8 * _round_up(hw_t, 128) * 4
    need1 = 2 * in_tile_bytes + 2 * out_row_bytes + (1 << 20)
    vmem1 = int(min(max(need1, 32 << 20), 112 << 20))

    maxmap = pl.pallas_call(
        channel_max_kernel,
        out_shape=jax.ShapeDtypeStruct((B, 1, HW), jnp.float32),
        grid=(B, n_hw, n_ct),
        in_specs=[pl.BlockSpec((1, tc, hw_t), lambda b, s, c: (b, c, s))],
        out_specs=pl.BlockSpec((1, 1, hw_t), lambda b, s, c: (b, 0, s)),
        compiler_params=pltpu.CompilerParams(
            dimension_semantics=("parallel", "parallel", "arbitrary"),
            vmem_limit_bytes=vmem1),
        cost_estimate=pl.CostEstimate(
            flops=int(B * C * HW),
            transcendentals=0,
            bytes_accessed=int(B * C * HW * elt + B * HW * 4)),
    )(x_flat)

    # ---------- pass 2: 7x7 conv (1->1, no bias) + sigmoid on the tiny (B, H, W) max map ----------
    Hp = _round_up(H + 2 * PAD, 8)
    Wp = _round_up(W + 2 * PAD, 128)
    Wm = _round_up(W, 128)
    in2 = _round_up(H, 8) * _round_up(W, 128) * 4
    out2 = _round_up(H, 8) * Wm * elt
    need2 = 2 * in2 + 2 * out2 + Hp * Wp * 4 + (1 << 20)
    vmem2 = int(min(max(need2, 32 << 20), 112 << 20))

    out = pl.pallas_call(
        conv_sigmoid_kernel,
        out_shape=jax.ShapeDtypeStruct((B, H, Wm), x.dtype),
        grid=(B,),
        in_specs=[
            pl.BlockSpec(memory_space=pltpu.MemorySpace.SMEM),   # flat 7x7 weights
            pl.BlockSpec((1, H, W), lambda b: (b, 0, 0)),        # one batch's max map
        ],
        out_specs=pl.BlockSpec((1, H, Wm), lambda b: (b, 0, 0)),
        scratch_shapes=[pltpu.VMEM((Hp, Wp), jnp.float32)],
        compiler_params=pltpu.CompilerParams(
            dimension_semantics=("parallel",),
            vmem_limit_bytes=vmem2),
        cost_estimate=pl.CostEstimate(
            flops=int(2 * KSIZE * KSIZE * B * HW),
            transcendentals=int(B * HW),
            bytes_accessed=int(B * HW * 4 + B * H * Wm * elt)),
    )(w_flat, maxmap.reshape(B, H, W))

    return out[:, :, :W].reshape(B, 1, H, W)


def _reference(x, weight):
    # Pure-JAX reference mirroring the PyTorch forward.
    max_out = jnp.max(x, axis=1, keepdims=True)                        # (B, 1, H, W)
    w = weight.reshape(1, 1, KSIZE, KSIZE)                             # (O=1, I=1, 7, 7)
    y = lax.conv_general_dilated(
        max_out, w, window_strides=(1, 1), padding=[(PAD, PAD), (PAD, PAD)],
        dimension_numbers=("NCHW", "OIHW", "NCHW"))
    return jax.nn.sigmoid(y)


if __name__ == "__main__":
    key = jax.random.PRNGKey(0)
    kx, kw, kx2 = jax.random.split(key, 3)

    # Deterministic Conv2d(1, 1, 7, bias=False)-style init: fan_in = 1*7*7.
    bound = 1.0 / jnp.sqrt(jnp.float32(KSIZE * KSIZE))
    weight = jax.random.uniform(kw, (KSIZE, KSIZE), dtype=jnp.float32,
                                minval=-bound, maxval=bound)

    # Main small test (default tiling: single channel / spatial step).
    B, C, H, W = 2, 4, 16, 16
    x = jax.random.normal(kx, (B, C, H, W), dtype=jnp.float32)
    ref = _reference(x, weight)
    out = jax.block_until_ready(spatial_attention(x, weight))
    assert out.shape == (B, 1, H, W)
    assert jnp.allclose(out, ref, atol=1e-5, rtol=1e-5), "Pallas output mismatch vs reference"

    # Exercise the multi-step accumulation paths: 2 channel tiles x 2 spatial tiles.
    x2 = jax.random.normal(kx2, (2, 16, 16, 16), dtype=jnp.float32)
    ref2 = _reference(x2, weight)
    out2 = jax.block_until_ready(
        spatial_attention(x2, weight, channel_tile=8, hw_tile=128))
    assert jnp.allclose(out2, ref2, atol=1e-5, rtol=1e-5), "Pallas (tiled) mismatch vs reference"

    # Exercise native-dtype (bf16) streaming: no wrapper-side f32 cast of x.
    xb = x.astype(jnp.bfloat16)
    refb = _reference(xb.astype(jnp.float32), weight)
    outb = jax.block_until_ready(spatial_attention(xb, weight))
    assert outb.dtype == jnp.bfloat16
    assert jnp.allclose(outb.astype(jnp.float32), refb, atol=2e-2, rtol=2e-2), \
        "Pallas (bf16) mismatch vs reference"

    print("KERNEL_OK")
</pallas_src>

<mosaic_0001>
module attributes {stable_mosaic.version = 11 : i64} {
  func.func @channel_max_kernel(%arg0: i32, %arg1: i32, %arg2: i32, %arg3: memref<1x4x256xf32, #tpu.memory_space<vmem>>, %arg4: memref<1x1x256xf32, #tpu.memory_space<vmem>>) attributes {dimension_semantics = [#tpu.dimension_semantics<parallel>, #tpu.dimension_semantics<parallel>, #tpu.dimension_semantics<arbitrary>], iteration_bounds = array<i64: 2, 1, 1>, scalar_prefetch = 0 : i64, scratch_operands = 0 : i64, tpu.core_type = #tpu.core_type<tc>, window_params = [{transform_indices = @transform_0, window_bounds = array<i64: 1, 4, 256>}, {transform_indices = @transform_1, window_bounds = array<i64: 1, 1, 256>}]} {
    %c0 = arith.constant 0 : index
    %c0_0 = arith.constant 0 : index
    %c0_1 = arith.constant 0 : index
    %0 = vector.load %arg3[%c0, %c0_0, %c0_1] : memref<1x4x256xf32, #tpu.memory_space<vmem>>, vector<1x4x256xf32>
    %1 = vector.shape_cast %0 : vector<1x4x256xf32> to vector<4x256xf32>
    %cst = arith.constant dense<0xFF800000> : vector<256xf32>
    %2 = vector.multi_reduction <maximumf>, %1, %cst [0] : vector<4x256xf32> to vector<256xf32>
    %3 = vector.shape_cast %2 : vector<256xf32> to vector<1x256xf32>
    %c0_i32 = arith.constant 0 : i32
    %4 = arith.cmpi eq, %arg2, %c0_i32 : i32
    %5 = arith.extui %4 : i1 to i32
    %c0_i32_2 = arith.constant 0 : i32
    %6 = arith.cmpi ne, %5, %c0_i32_2 : i32
    scf.if %6 {
      %c0_5 = arith.constant 0 : index
      %c0_6 = arith.constant 0 : index
      %c0_7 = arith.constant 0 : index
      %10 = vector.load %arg4[%c0_5, %c0_6, %c0_7] : memref<1x1x256xf32, #tpu.memory_space<vmem>>, vector<1x1x256xf32>
      %11 = vector.shape_cast %10 : vector<1x1x256xf32> to vector<1x256xf32>
      %12 = vector.shape_cast %3 : vector<1x256xf32> to vector<1x1x256xf32>
      tpu.vector_store %arg4[%c0_5, %c0_6, %c0_7], %12 {strides = array<i32>} : memref<1x1x256xf32, #tpu.memory_space<vmem>>, vector<1x1x256xf32>,
    } else {
    }
    %c0_i32_3 = arith.constant 0 : i32
    %7 = arith.cmpi sgt, %arg2, %c0_i32_3 : i32
    %8 = arith.extui %7 : i1 to i32
    %c0_i32_4 = arith.constant 0 : i32
    %9 = arith.cmpi ne, %8, %c0_i32_4 : i32
    scf.if %9 {
      %c0_5 = arith.constant 0 : index
      %c0_6 = arith.constant 0 : index
      %c0_7 = arith.constant 0 : index
      %10 = vector.load %arg4[%c0_5, %c0_6, %c0_7] : memref<1x1x256xf32, #tpu.memory_space<vmem>>, vector<1x1x256xf32>
      %11 = vector.shape_cast %10 : vector<1x1x256xf32> to vector<1x256xf32>
      %12 = arith.maximumf %11, %3 : vector<1x256xf32>
      %c0_8 = arith.constant 0 : index
      %c0_9 = arith.constant 0 : index
      %c0_10 = arith.constant 0 : index
      %13 = vector.load %arg4[%c0_8, %c0_9, %c0_10] : memref<1x1x256xf32, #tpu.memory_space<vmem>>, vector<1x1x256xf32>
      %14 = vector.shape_cast %13 : vector<1x1x256xf32> to vector<1x256xf32>
      %15 = vector.shape_cast %12 : vector<1x256xf32> to vector<1x1x256xf32>
      tpu.vector_store %arg4[%c0_8, %c0_9, %c0_10], %15 {strides = array<i32>} : memref<1x1x256xf32, #tpu.memory_space<vmem>>, vector<1x1x256xf32>,
    } else {
    }
    return
  }
  func.func @transform_0(%arg0: i32, %arg1: i32, %arg2: i32) -> (i32, i32, i32) {
    %c0_i32 = arith.constant 0 : i32
    return %arg0, %arg2, %arg1 : i32, i32, i32
  }
  func.func @transform_1(%arg0: i32, %arg1: i32, %arg2: i32) -> (i32, i32, i32) {
    %c0_i32 = arith.constant 0 : i32
    %c0_i32_0 = arith.constant 0 : i32
    return %arg0, %c0_i32, %arg1 : i32, i32, i32
  }
}

</mosaic_0001>

<llo_original>
// kernel: tpu_custom_call.1
$region0: #{tpu_custom_call.1}
  #allocation0 [shape = 'u32[]', space=smem, size = 0x4, offset = 0x4, fixed_abs, tag = 'smem constant byte address 0x4 - core index']
  #allocation1 [shape = 'u32[144,128]{1,0:T(1,128)}', space=vmem, size = 0x12000, scoped, tag = 'internal scratch']
  %s0 = inlined_call_operand.hbm [shape: f32[2,4,256], index: 0, kind: input, shape index: {}]
  %s1 = inlined_call_operand.hbm [shape: f32[2,1,256], index: 1, kind: output, shape index: {}]
  %s2 = sld [smem:[#allocation0]]
  $region49: #{tpu_custom_call.1} parent=0
    _
  %s4 = ssub.s32 1, %s2
  %s5 = scalar_select 0, %s4, %s2
  $region1: #{tpu_custom_call.1} parent=0
    #allocation2 [shape = 'u8[8192]{0}', space=vmem, size = 0x2000, scoped, tag = 'input window, operand 0']
    #allocation3 [shape = 's32[2]{0}', space=sflag, size = 0x8, scoped, tag = 'scoped memory for tpu_custom_call.1']
    #allocation4 [shape = 's32[2]{0}', space=sflag, size = 0x8, scoped, tag = 'scoped memory for tpu_custom_call.1']
    #allocation5 [shape = 'u8[2048]{0}', space=vmem, size = 0x800, scoped, tag = 'output window, operand 0']
    %6 = vsyncpa [#allocation3], 0
    %s7 = scalar_lea.sflag [#allocation3], 1
    %8 = vsyncpa %s7, 0
    %9 = vsyncpa [#allocation4], 0
    %s10 = scalar_lea.sflag [#allocation4], 1
    %11 = vsyncpa %s10, 0
    loop: start=0, step=1, limit=4
    $region2: #{tpu_custom_call.1} parent=1 // loop_pre_header
      _
    $region3: #{tpu_custom_call.1} parent=1 // loop_header
      %s13 = sphi 0, %s17
      %p14 = scmp.ge.s32.totalorder %s13, 4
      %s20 = sphi 0, %s39
      %s21 = sphi 0, %s35
      %s22 = sphi 0, %s31
      %s23 = sphi 0, %s20
      %s24 = sphi 0, %s21
      %s25 = sphi 0, %s22
      %s26 = sphi 0, %s23
      %s27 = sphi 0, %s24
      %s28 = sphi 0, %s25
      %s46 = sphi 0, %s48
      %s49 = sphi 0, %s46
      %s50 = sphi 0, %s49
      %s66 = sphi 0, %s50
      %s74 = sphi 0, %s76
      %s77 = sphi 0, %s74
      %s78 = sphi 0, %s77
      %s94 = sphi 0, %s78
    $region4: #{tpu_custom_call.1} parent=1 // loop_header_branch
      %16 = sbr.rel (%p14) target = $region8
    $region5: #{tpu_custom_call.1} parent=1 // loop_body
      %s18 = ssub.s32 %s13, 1
      %s19 = ssub.s32 %s13, 2
      %s29 = sadd.s32 1, %s22
      %p30 = scmp.ge.s32.totalorder %s29, 1
      %s31 = scalar_select %p30, 0, %s29
      %s32 = sadd.s32 1, %s21
      %s33 = scalar_select %p30, %s32, %s21
      %p34 = scmp.ge.s32.totalorder %s33, 1
      %s35 = scalar_select %p34, 0, %s33
      %s36 = sadd.s32 1, %s20
      %s37 = scalar_select %p34, %s36, %s20
      %p38 = scmp.ge.s32.totalorder %s37, 2
      %s39 = scalar_select %p38, 0, %s37
      %s40 = ssub.s32 %s20, %s39
      %s41 = ssub.s32 %s22, %s31
      %s42 = sor.u32 %s40, %s41
      %s43 = ssub.s32 %s21, %s35
      %s44 = sor.u32 %s42, %s43
      %p45 = scmp.eq.s32.totalorder %s44, 0
      %s47 = sadd.s32 %s46, 1
      %s48 = scalar_select %p45, %s46, %s47
      %p51 = pneg %p45
      %p52 = scmp.eq.s32.totalorder %s13, 1
      %p53 = por %p51, %p52
      %p54 = scmp.ne.s32.totalorder %s46, %s49
      %p55 = scmp.eq.s32.totalorder %s13, 0
      %p56 = por %p54, %p55
      %p57 = scmp.ne.s32.totalorder %s46, %s49
      %p58 = scmp.eq.s32.totalorder %s18, 1
      %p59 = por %p57, %p58
      %p60 = scmp.ne.s32.totalorder %s49, %s50
      %p61 = scmp.eq.s32.totalorder %s18, 0
      %p62 = por %p60, %p61
      %p63 = scmp.ne.s32.totalorder %s49, %s50
      %p64 = scmp.eq.s32.totalorder %s19, 1
      %p65 = por %p63, %p64
      %p67 = scmp.ne.s32.totalorder %s50, %s66
      %p68 = scmp.eq.s32.totalorder %s19, 0
      %p69 = por %p67, %p68
      %s70 = ssub.s32 %s20, %s39
      %s71 = ssub.s32 %s21, %s35
      %s72 = sor.u32 %s70, %s71
      %p73 = scmp.eq.s32.totalorder %s72, 0
      %s75 = sadd.s32 %s74, 1
      %s76 = scalar_select %p73, %s74, %s75
      %p79 = pneg %p73
      %p80 = scmp.eq.s32.totalorder %s13, 1
      %p81 = por %p79, %p80
      %p82 = scmp.ne.s32.totalorder %s74, %s77
      %p83 = scmp.eq.s32.totalorder %s13, 0
      %p84 = por %p82, %p83
      %p85 = scmp.ne.s32.totalorder %s74, %s77
      %p86 = scmp.eq.s32.totalorder %s18, 1
      %p87 = por %p85, %p86
      %p88 = scmp.ne.s32.totalorder %s77, %s78
      %p89 = scmp.eq.s32.totalorder %s18, 0
      %p90 = por %p88, %p89
      %p91 = scmp.ne.s32.totalorder %s77, %s78
      %p92 = scmp.eq.s32.totalorder %s19, 1
      %p93 = por %p91, %p92
      %p95 = scmp.ne.s32.totalorder %s78, %s94
      %p96 = scmp.eq.s32.totalorder %s19, 0
      %p97 = por %p95, %p96
      %p98 = scmp.le.s32.totalorder 1, %s13
      %p99 = scmp.lt.s32.totalorder %s13, 3
      %p100 = pnand %p98, %p99
      %p101 = pneg %p100
      // Predicated region
      $region9: #{tpu_custom_call.1} parent=5 // pred_check
        _
      $region10: #{tpu_custom_call.1} parent=5 // pred_check_branch
        %103 = sbr.rel (%p100) target = $region12
      $region11: #{tpu_custom_call.1} parent=5 // pred_region
        %s104 = ssub.s32 %s13, 1
      $region12: #{tpu_custom_call.1} parent=5 // pred_fallthru
        _
      %p105 = scmp.lt.s32.totalorder %s13, 2
      // Predicated region
      $region13: #{tpu_custom_call.1} parent=5 // pred_check
        %p106 = pneg %p105
      $region14: #{tpu_custom_call.1} parent=5 // pred_check_branch
        %108 = sbr.rel (%p106) target = $region16
      $region15: #{tpu_custom_call.1} parent=5 // pred_region
        // Predicated region
        $region17: #{tpu_custom_call.1} parent=15 // pred_check
          %p109 = pneg %p56
        $region18: #{tpu_custom_call.1} parent=15 // pred_check_branch
          %111 = sbr.rel (%p109) target = $region20
        $region19: #{tpu_custom_call.1} parent=15 // pred_region
          %s112 = sand.u32 %s46, 1
          %s113 = scalar_lea.sflag [#allocation3], %s112
          %s114 = sand.u32 %s46, 1
          %s115 = smul.addr %s114, 8
          %s116 = scalar_lea.vmem [#allocation2], %s115
          %s117 = smul.u32 2, %s21
          %s119 = ssub.s32 128, 128
          %120 = vsyncadd %s113, %s119
          %s121 = smul.addr %s22, 2
          %s122 = sadd.s32 %s117, %s121
          %s123 = smul.addr %s20, 2
          %s124 = sadd.s32 %s122, %s123
          %s125 = smul.addr %s124, 64
          %s126 = scalar_lea.hbm %s0, %s125
          %s128 = sshll.u32 %s116, 4
          %s129 = int_to_ptr.vmem [resolvable:$true] %s128
          %131 = dma.hbm_to_vmem [thread:$0]  %s126, 128, %s129, %s113
        $region20: #{tpu_custom_call.1} parent=15 // pred_fallthru
          _
      $region16: #{tpu_custom_call.1} parent=5 // pred_fallthru
        _
      %p132 = scmp.le.s32.totalorder 1, %s13
      %p133 = scmp.lt.s32.totalorder %s13, 3
      %p134 = pnand %p132, %p133
      %p135 = pneg %p134
      // Predicated region
      $region21: #{tpu_custom_call.1} parent=5 // pred_check
        _
      $region22: #{tpu_custom_call.1} parent=5 // pred_check_branch
        %137 = sbr.rel (%p134) target = $region24
      $region23: #{tpu_custom_call.1} parent=5 // pred_region
        %s138 = ssub.s32 %s13, 1
        %s139 = sand.u32 %s49, 1
        %s140 = scalar_lea.sflag [#allocation3], %s139
        %s141 = sand.u32 %s49, 1
        %s142 = smul.addr %s141, 8
        %s143 = scalar_lea.vmem [#allocation2], %s142
        // Predicated region
        $region25: #{tpu_custom_call.1} parent=23 // pred_check
          %p144 = pneg %p62
        $region26: #{tpu_custom_call.1} parent=23 // pred_check_branch
          %146 = sbr.rel (%p144) target = $region28
        $region27: #{tpu_custom_call.1} parent=23 // pred_region
          %147 = dma.done %s140, 128
        $region28: #{tpu_custom_call.1} parent=23 // pred_fallthru
          _
        %s148 = sand.u32 %s49, 1
        %s149 = scalar_lea.sflag [#allocation3], %s148
        %s150 = sand.u32 %s49, 1
        %s151 = smul.addr %s150, 8
        %s152 = scalar_lea.vmem [#allocation2], %s151
        %p153 = pneg %p62
        %p154 = pneg %p59
        %p155 = pneg %p90
        %p156 = pneg %p87
        %s157 = sand.u32 %s77, 1
        %s158 = scalar_lea.sflag [#allocation4], %s157
        %s159 = sand.u32 %s77, 1
        %s160 = smul.addr %s159, 2
        %s161 = scalar_lea.vmem [#allocation5], %s160
        %s162 = smul.u32 2, %s24
        %s163 = smul.u32 2, %s24
        %v164 = vld [vmem:[%s143] sm:$0xff]
        %v166 = vcombine.high %v164, %v164
        %vm168 = vcmask 1043456
        %v169 = vsel %vm168, %v164, -inf
        %v170 = vrot.slane %v169, 4
        %v171 = vmax.f32 %v169, %v170
        %v172 = vrot.slane %v171, 2
        %v173 = vmax.f32 %v171, %v172
        %v174 = vrot.slane %v173, 1
        %v175 = vmax.f32 %v173, %v174
        %v176 = vsel %vm168, %v166, -inf
        %v177 = vrot.slane %v176, 4
        %v178 = vmax.f32 %v176, %v177
        %v179 = vrot.slane %v178, 2
        %v180 = vmax.f32 %v178, %v179
        %v181 = vrot.slane %v180, 1
        %v182 = vmax.f32 %v180, %v181
        %p183 = scmp.eq.s32.totalorder %s25, 0
        // Predicated region
        $region29: #{tpu_custom_call.1} parent=23 // pred_check
          %p184 = pneg %p183
        $region30: #{tpu_custom_call.1} parent=23 // pred_check_branch
          %186 = sbr.rel (%p184) target = $region32
        $region31: #{tpu_custom_call.1} parent=23 // pred_region
          %v189 = vcombine.low %v175, %v182
          %v191 = vunpack.c.l.s4 1966171168
          %v192 = vunpack.c.0.s8 %v191
          %v193 = vlaneseq
          %v194 = vshrl.u32 %v193, 7
          %v195 = vsub.s32 %v192, %v194
          %v196 = vrot.slane %v189, %v195
          %v198 = vunpack.c.l.s4 1966171168
          %v199 = vunpack.c.0.s8 %v198
          %v200 = vlaneseq
          %v201 = vshrl.u32 %v200, 7
          %v202 = vsub.s32 %v199, %v201
          %v203 = vrot.slane %v196, %v202
          %v205 = vlaneseq
          %vm206 = vcmp.ge.s32.totalorder %v205, 0
          %vm207 = vcmp.lt.s32.totalorder %v205, 256
          %vm208 = vmand %vm206, %vm207
          %209 = vst.msk [vmem:[%s161] sm:$0x3] %vm208, %v203
        $region32: #{tpu_custom_call.1} parent=23 // pred_fallthru
          _
        %p210 = scmp.gt.s32.totalorder %s25, 0
        // Predicated region
        $region33: #{tpu_custom_call.1} parent=23 // pred_check
          %p211 = pneg %p210
        $region34: #{tpu_custom_call.1} parent=23 // pred_check_branch
          %213 = sbr.rel (%p211) target = $region36
        $region35: #{tpu_custom_call.1} parent=23 // pred_region
          %v214 = vld [vmem:[%s161] sm:$0x3]
          %v217 = vcombine.low %v175, %v182
          %v219 = vunpack.c.l.s4 1966171168
          %v220 = vunpack.c.0.s8 %v219
          %v221 = vlaneseq
          %v222 = vshrl.u32 %v221, 7
          %v223 = vsub.s32 %v220, %v222
          %v224 = vrot.slane %v217, %v223
          %v226 = vunpack.c.l.s4 1966171168
          %v227 = vunpack.c.0.s8 %v226
          %v228 = vlaneseq
          %v229 = vshrl.u32 %v228, 7
          %v230 = vsub.s32 %v227, %v229
          %v231 = vrot.slane %v224, %v230
          %v233 = vmax.f32 %v214, %v231
          %v234 = vlaneseq
          %vm235 = vcmp.ge.s32.totalorder %v234, 0
          %vm236 = vcmp.lt.s32.totalorder %v234, 256
          %vm237 = vmand %vm235, %vm236
          %238 = vst.msk [vmem:[%s161] sm:$0x3] %vm237, %v233
        $region36: #{tpu_custom_call.1} parent=23 // pred_fallthru
          _
        %s239 = sand.u32 %s77, 1
        %s240 = scalar_lea.sflag [#allocation4], %s239
        %s241 = sand.u32 %s77, 1
        %s242 = smul.addr %s241, 2
        %s243 = scalar_lea.vmem [#allocation5], %s242
        // Predicated region
        $region37: #{tpu_custom_call.1} parent=23 // pred_check
          %p244 = pneg %p87
        $region38: #{tpu_custom_call.1} parent=23 // pred_check_branch
          %246 = sbr.rel (%p244) target = $region40
        $region39: #{tpu_custom_call.1} parent=23 // pred_region
          %s247 = smul.u32 2, %s24
          %s249 = ssub.s32 32, 32
          %250 = vsyncadd %s240, %s249
          %s251 = smul.addr %s23, 2
          %s252 = sadd.s32 %s247, %s251
          %s253 = smul.addr %s252, 16
          %s254 = scalar_lea.hbm %s1, %s253
          %s256 = sshll.u32 %s243, 4
          %s257 = int_to_ptr.vmem [resolvable:$true] %s256
          %259 = dma.vmem_to_hbm [thread:$0]  %s257, 32, %s254, %s240
        $region40: #{tpu_custom_call.1} parent=23 // pred_fallthru
          _
      $region24: #{tpu_custom_call.1} parent=5 // pred_fallthru
        _
      %p260 = scmp.le.s32.totalorder 2, %s13
      // Predicated region
      $region41: #{tpu_custom_call.1} parent=5 // pred_check
        %p261 = pneg %p260
      $region42: #{tpu_custom_call.1} parent=5 // pred_check_branch
        %263 = sbr.rel (%p261) target = $region44
      $region43: #{tpu_custom_call.1} parent=5 // pred_region
        %s264 = ssub.s32 %s13, 2
        // Predicated region
        $region45: #{tpu_custom_call.1} parent=43 // pred_check
          %p265 = pneg %p93
        $region46: #{tpu_custom_call.1} parent=43 // pred_check_branch
          %267 = sbr.rel (%p265) target = $region48
        $region47: #{tpu_custom_call.1} parent=43 // pred_region
          %s268 = sand.u32 %s78, 1
          %s269 = scalar_lea.sflag [#allocation4], %s268
          %s270 = sand.u32 %s78, 1
          %s271 = smul.addr %s270, 2
          %s272 = scalar_lea.vmem [#allocation5], %s271
          %273 = dma.done %s269, 32
        $region48: #{tpu_custom_call.1} parent=43 // pred_fallthru
          _
      $region44: #{tpu_custom_call.1} parent=5 // pred_fallthru
        _
    $region6: #{tpu_custom_call.1} parent=1 // loop_footer
      %s17 = sadd.s32 1, %s13
    $region7: #{tpu_custom_call.1} parent=1 // loop_footer_branch
      %12 = sbr.rel target = $region3
    $region8: #{tpu_custom_call.1} parent=1 // loop_exit
      _
    %274 = vsyncpa [#allocation3], 1
    %s275 = scalar_lea.sflag [#allocation3], 1
    %276 = vsyncpa %s275, 1
    %277 = vsyncpa [#allocation4], 1
    %s278 = scalar_lea.sflag [#allocation4], 1
    %279 = vsyncpa %s278, 1

</llo_original>
